<compile_context>
chip_gen: v7x
topology: tpu7x:2x2x1
jax: 0.10.0
libtpu: 0.0.40
codegen_flags: <defaults>
</compile_context>

<pallas_src>
import functools

import jax
import jax.numpy as jnp
from jax import lax
from jax.experimental import pallas as pl
from jax.experimental.pallas import tpu as pltpu


def _linear_kernel(x_ref, w_ref, b_ref, o_ref):
    """One (B, tn) output slab: y = x @ w_slab + b_slab.

    x_ref: (B, D)      resident across all grid steps (f32, cast to bf16 here)
    w_ref: (D, tn)     pre-transposed, pre-padded bf16 weight slab
    b_ref: (1, tn)     bias slab (f32)
    o_ref: (B, tn)     output slab (f32)
    """
    y = lax.dot_general(
        x_ref[...].astype(jnp.bfloat16),
        w_ref[...],
        dimension_numbers=(((1,), (0,)), ((), ())),  # contract D with D
        preferred_element_type=jnp.float32,          # f32 accumulation on MXU
    )
    o_ref[...] = (y + b_ref[...]).astype(o_ref.dtype)


def prepare_resnext_top_params(weight, bias, *, tn=256):
    """One-time parameter prep (outside the per-step jitted call).

    weight: [C, D] f32 (PyTorch nn.Linear layout)
    bias:   [C]    f32
    Returns (w_t_bf16 [D, C_pad], bias_2d [1, C_pad], tile_n).
    """
    C, D = weight.shape
    assert bias.shape == (C,)

    c_128 = 128 * pl.cdiv(C, 128)
    tile_n = min(tn, c_128)          # lane tile: multiple of 128, capped at tn
    c_pad = tile_n * pl.cdiv(C, tile_n)

    # Pre-transpose to [D, C] (kernel contracts (1,)x(0,) -> no in-kernel
    # weight transpose), cast to bf16 once, pad class dim once.
    w_t = jnp.transpose(weight).astype(jnp.bfloat16)
    b2d = bias.reshape(1, C).astype(jnp.float32)
    if c_pad != C:
        w_t = jnp.pad(w_t, ((0, 0), (0, c_pad - C)))
        b2d = jnp.pad(b2d, ((0, 0), (0, c_pad - C)))

    return jax.block_until_ready(w_t), jax.block_until_ready(b2d), tile_n


@functools.partial(jax.jit, static_argnames=("tile_n", "num_classes"))
def resnext_top_no_softmax(x, w_t, b2d, *, tile_n, num_classes):
    """y = x @ weight.T + bias  (PyTorch nn.Linear semantics).

    x:    [B, D]       f32
    w_t:  [D, C_pad]   bf16 (from prepare_resnext_top_params)
    b2d:  [1, C_pad]   f32
    returns [B, num_classes] f32
    """
    B, D = x.shape
    Dw, c_pad = w_t.shape
    assert Dw == D and b2d.shape == (1, c_pad)
    assert c_pad % tile_n == 0

    grid = (c_pad // tile_n,)

    cost = pl.CostEstimate(
        flops=2 * B * D * c_pad,
        transcendentals=0,
        bytes_accessed=(c_pad * D * w_t.dtype.itemsize   # weight stream (dominant)
                        + B * D * 4                       # x (read once)
                        + B * c_pad * 4                   # output
                        + c_pad * 4),                     # bias
    )

    out = pl.pallas_call(
        _linear_kernel,
        out_shape=jax.ShapeDtypeStruct((B, c_pad), x.dtype),
        grid_spec=pltpu.PrefetchScalarGridSpec(
            num_scalar_prefetch=0,
            grid=grid,
            in_specs=[
                pl.BlockSpec((B, D), lambda j: (0, 0)),        # x: resident, 1 DMA
                pl.BlockSpec((D, tile_n), lambda j: (0, j)),   # weight col slab
                pl.BlockSpec((1, tile_n), lambda j: (0, j)),   # bias slab
            ],
            out_specs=pl.BlockSpec((B, tile_n), lambda j: (0, j)),
        ),
        compiler_params=pltpu.CompilerParams(
            dimension_semantics=("parallel",),  # shard class axis across TCs
        ),
        cost_estimate=cost,
    )(x, w_t, b2d)

    if c_pad != num_classes:
        out = out[:, :num_classes]  # cheap slice of the small output only
    return out


if __name__ == "__main__":
    # Small synthetic shapes consistent with a Linear classification head:
    # batch=8, in_features=256, num_classes=1000 (exercises the C-padding path,
    # matching a real ResNeXt head's non-128-multiple class count).
    B, D, C = 8, 256, 1000

    key = jax.random.PRNGKey(0)
    kx, kw, kb = jax.random.split(key, 3)

    x = jax.random.normal(kx, (B, D), dtype=jnp.float32)
    # Deterministic parameter init (synthetic — not a checkpoint load).
    weight = jax.random.normal(kw, (C, D), dtype=jnp.float32) * 0.02
    bias = jax.random.normal(kb, (C,), dtype=jnp.float32) * 0.01

    # One-time parameter prep (transpose + pad + bf16 cast) — not per call.
    w_t, b2d, tile_n = prepare_resnext_top_params(weight, bias, tn=256)

    y = resnext_top_no_softmax(x, w_t, b2d, tile_n=tile_n, num_classes=C)
    y = jax.block_until_ready(y)
    assert y.shape == (B, C)

    # Correctness check against a same-precision (bf16 weights/activations,
    # f32 accumulate) reference of nn.Linear.
    x_bf = x.astype(jnp.bfloat16).astype(jnp.float32)
    w_bf = weight.astype(jnp.bfloat16).astype(jnp.float32)
    y_ref_bf16 = x_bf @ w_bf.T + bias
    assert jnp.allclose(y, y_ref_bf16, atol=2e-3, rtol=2e-3)

    # Loose sanity check against the full-f32 nn.Linear reference.
    y_ref_f32 = x @ weight.T + bias
    assert jnp.allclose(y, y_ref_f32, atol=5e-2, rtol=5e-2)

    print("KERNEL_OK")
</pallas_src>

<mosaic_0001>
module attributes {stable_mosaic.version = 11 : i64} {
  func.func @_linear_kernel(%arg0: i32, %arg1: memref<8x256xf32, #tpu.memory_space<vmem>>, %arg2: memref<256x256xbf16, #tpu.memory_space<vmem>>, %arg3: memref<1x256xf32, #tpu.memory_space<vmem>>, %arg4: memref<8x256xf32, #tpu.memory_space<vmem>>) attributes {dimension_semantics = [#tpu.dimension_semantics<parallel>], iteration_bounds = array<i64: 4>, scalar_prefetch = 0 : i64, scratch_operands = 0 : i64, tpu.core_type = #tpu.core_type<tc>, window_params = [{pipeline_mode = #tpu.pipeline_mode<synchronous>, transform_indices = @transform_0, window_bounds = array<i64: 8, 256>}, {transform_indices = @transform_1, window_bounds = array<i64: 256, 256>}, {transform_indices = @transform_2, window_bounds = array<i64: 1, 256>}, {transform_indices = @transform_3, window_bounds = array<i64: 8, 256>}]} {
    %c0 = arith.constant 0 : index
    %c0_0 = arith.constant 0 : index
    %0 = vector.load %arg1[%c0, %c0_0] : memref<8x256xf32, #tpu.memory_space<vmem>>, vector<8x256xf32>
    %1 = arith.truncf %0 : vector<8x256xf32> to vector<8x256xbf16>
    %c0_1 = arith.constant 0 : index
    %c0_2 = arith.constant 0 : index
    %2 = vector.load %arg2[%c0_1, %c0_2] : memref<256x256xbf16, #tpu.memory_space<vmem>>, vector<256x256xbf16>
    %cst = arith.constant dense<0.000000e+00> : vector<8x256xf32>
    %3 = tpu.matmul %1, %2, %cst {dimension_numbers = #tpu.dot_dimension_numbers<[1], [0], [0], [1], [0, 0, 1, 1], [], []>} : vector<8x256xbf16>, vector<256x256xbf16>, vector<8x256xf32> -> vector<8x256xf32>
    %c0_3 = arith.constant 0 : index
    %c0_4 = arith.constant 0 : index
    %4 = vector.load %arg3[%c0_3, %c0_4] : memref<1x256xf32, #tpu.memory_space<vmem>>, vector<1x256xf32>
    %5 = vector.broadcast %4 : vector<1x256xf32> to vector<8x256xf32>
    %6 = arith.addf %3, %5 : vector<8x256xf32>
    %c0_5 = arith.constant 0 : index
    %c0_6 = arith.constant 0 : index
    %7 = vector.load %arg4[%c0_5, %c0_6] : memref<8x256xf32, #tpu.memory_space<vmem>>, vector<8x256xf32>
    tpu.vector_store %arg4[%c0_5, %c0_6], %6 {strides = array<i32>} : memref<8x256xf32, #tpu.memory_space<vmem>>, vector<8x256xf32>,
    return
  }
  func.func @transform_0(%arg0: i32) -> (i32, i32) {
    %c0_i32 = arith.constant 0 : i32
    %c0_i32_0 = arith.constant 0 : i32
    %c0_i32_1 = arith.constant 0 : i32
    return %c0_i32, %c0_i32_0 : i32, i32
  }
  func.func @transform_1(%arg0: i32) -> (i32, i32) {
    %c0_i32 = arith.constant 0 : i32
    %c0_i32_0 = arith.constant 0 : i32
    return %c0_i32, %arg0 : i32, i32
  }
  func.func @transform_2(%arg0: i32) -> (i32, i32) {
    %c0_i32 = arith.constant 0 : i32
    %c0_i32_0 = arith.constant 0 : i32
    return %c0_i32, %arg0 : i32, i32
  }
  func.func @transform_3(%arg0: i32) -> (i32, i32) {
    %c0_i32 = arith.constant 0 : i32
    %c0_i32_0 = arith.constant 0 : i32
    return %c0_i32, %arg0 : i32, i32
  }
}

</mosaic_0001>

<llo_original>
// kernel: resnext_top_no_softmax.1
$region0: #{resnext_top_no_softmax.1}
  #allocation0 [shape = 'u32[]', space=smem, size = 0x4, offset = 0x4, fixed_abs, tag = 'smem constant byte address 0x4 - core index']
  #allocation1 [shape = 'u32[144,128]{1,0:T(1,128)}', space=vmem, size = 0x12000, scoped, tag = 'internal scratch']
  %s0 = inlined_call_operand.hbm [shape: f32[8,256], index: 0, kind: input, shape index: {}]
  %s1 = inlined_call_operand.hbm [shape: bf16[256,1024], index: 1, kind: input, shape index: {}]
  %s2 = inlined_call_operand.hbm [shape: f32[1,1024], index: 2, kind: input, shape index: {}]
  %s3 = inlined_call_operand.hbm [shape: f32[8,1024], index: 3, kind: output, shape index: {}]
  %s4 = sld [smem:[#allocation0]]
  $region57: #{resnext_top_no_softmax.1} parent=0
    _
  %s6 = ssub.s32 1, %s4
  %s7 = scalar_select 0, %s6, %s4
  $region1: #{resnext_top_no_softmax.1} parent=0
    #allocation2 [shape = 'u8[8192]{0}', space=vmem, size = 0x2000, scoped, tag = 'input window, operand 0, single buffered']
    #allocation3 [shape = 's32[2]{0}', space=sflag, size = 0x8, scoped, tag = 'scoped memory for resnext_top_no_softmax.1']
    #allocation4 [shape = 's32[2]{0}', space=sflag, size = 0x8, scoped, tag = 'scoped memory for resnext_top_no_softmax.1']
    #allocation5 [shape = 'u8[262144]{0}', space=vmem, size = 0x40000, scoped, tag = 'input window, operand 1']
    #allocation6 [shape = 's32[2]{0}', space=sflag, size = 0x8, scoped, tag = 'scoped memory for resnext_top_no_softmax.1']
    #allocation7 [shape = 'u8[2048]{0}', space=vmem, size = 0x800, scoped, tag = 'input window, operand 2']
    #allocation8 [shape = 'u8[16384]{0}', space=vmem, size = 0x4000, scoped, tag = 'output window, operand 0']
    %8 = vsyncpa [#allocation3], 0
    %9 = vsyncpa [#allocation6], 0
    %s10 = scalar_lea.sflag [#allocation6], 1
    %11 = vsyncpa %s10, 0
    %12 = vsyncpa [#allocation4], 0
    %s13 = scalar_lea.sflag [#allocation4], 1
    %14 = vsyncpa %s13, 0
    loop: start=0, step=1, limit=6
    $region2: #{resnext_top_no_softmax.1} parent=1 // loop_pre_header
      _
    $region3: #{resnext_top_no_softmax.1} parent=1 // loop_header
      %s16 = sphi 0, %s20
      %p17 = scmp.ge.s32.totalorder %s16, 6
      %s24 = sphi 0, %s24
      %s26 = sphi 0, %s24
      %s27 = sphi 0, %s26
      %s41 = sphi 0, %s27
      %s47 = sphi 0, %s49
      %s50 = sphi 0, %s47
      %s51 = sphi 0, %s50
      %s67 = sphi 0, %s51
      %s73 = sphi 0, %s75
      %s76 = sphi 0, %s73
      %s77 = sphi 0, %s76
      %s93 = sphi 0, %s77
      %s99 = sphi 0, %s101
      %s102 = sphi 0, %s99
      %s103 = sphi 0, %s102
      %s119 = sphi 0, %s103
    $region4: #{resnext_top_no_softmax.1} parent=1 // loop_header_branch
      %19 = sbr.rel (%p17) target = $region8
    $region5: #{resnext_top_no_softmax.1} parent=1 // loop_body
      %s21 = ssub.s32 %s16, 1
      %s22 = ssub.s32 %s16, 2
      %s23 = sadd.s32 %s16, 1
      %s25 = sadd.s32 %s24, 1
      %p28 = scmp.eq.s32.totalorder %s16, 3
      %p29 = scmp.ne.s32.totalorder %s24, %s26
      %p30 = scmp.eq.s32.totalorder %s16, 0
      %p31 = por %p29, %p30
      %p32 = scmp.ne.s32.totalorder %s24, %s26
      %p33 = scmp.eq.s32.totalorder %s21, 3
      %p34 = por %p32, %p33
      %p35 = scmp.ne.s32.totalorder %s26, %s27
      %p36 = scmp.eq.s32.totalorder %s21, 0
      %p37 = por %p35, %p36
      %p38 = scmp.ne.s32.totalorder %s26, %s27
      %p39 = scmp.eq.s32.totalorder %s22, 3
      %p40 = por %p38, %p39
      %p42 = scmp.ne.s32.totalorder %s27, %s41
      %p43 = scmp.eq.s32.totalorder %s22, 0
      %p44 = por %p42, %p43
      %s45 = ssub.s32 %s16, %s23
      %p46 = scmp.eq.s32.totalorder %s45, 0
      %s48 = sadd.s32 %s47, 1
      %s49 = scalar_select %p46, %s47, %s48
      %p52 = pneg %p46
      %p53 = scmp.eq.s32.totalorder %s16, 3
      %p54 = por %p52, %p53
      %p55 = scmp.ne.s32.totalorder %s47, %s50
      %p56 = scmp.eq.s32.totalorder %s16, 0
      %p57 = por %p55, %p56
      %p58 = scmp.ne.s32.totalorder %s47, %s50
      %p59 = scmp.eq.s32.totalorder %s21, 3
      %p60 = por %p58, %p59
      %p61 = scmp.ne.s32.totalorder %s50, %s51
      %p62 = scmp.eq.s32.totalorder %s21, 0
      %p63 = por %p61, %p62
      %p64 = scmp.ne.s32.totalorder %s50, %s51
      %p65 = scmp.eq.s32.totalorder %s22, 3
      %p66 = por %p64, %p65
      %p68 = scmp.ne.s32.totalorder %s51, %s67
      %p69 = scmp.eq.s32.totalorder %s22, 0
      %p70 = por %p68, %p69
      %s71 = ssub.s32 %s16, %s23
      %p72 = scmp.eq.s32.totalorder %s71, 0
      %s74 = sadd.s32 %s73, 1
      %s75 = scalar_select %p72, %s73, %s74
      %p78 = pneg %p72
      %p79 = scmp.eq.s32.totalorder %s16, 3
      %p80 = por %p78, %p79
      %p81 = scmp.ne.s32.totalorder %s73, %s76
      %p82 = scmp.eq.s32.totalorder %s16, 0
      %p83 = por %p81, %p82
      %p84 = scmp.ne.s32.totalorder %s73, %s76
      %p85 = scmp.eq.s32.totalorder %s21, 3
      %p86 = por %p84, %p85
      %p87 = scmp.ne.s32.totalorder %s76, %s77
      %p88 = scmp.eq.s32.totalorder %s21, 0
      %p89 = por %p87, %p88
      %p90 = scmp.ne.s32.totalorder %s76, %s77
      %p91 = scmp.eq.s32.totalorder %s22, 3
      %p92 = por %p90, %p91
      %p94 = scmp.ne.s32.totalorder %s77, %s93
      %p95 = scmp.eq.s32.totalorder %s22, 0
      %p96 = por %p94, %p95
      %s97 = ssub.s32 %s16, %s23
      %p98 = scmp.eq.s32.totalorder %s97, 0
      %s100 = sadd.s32 %s99, 1
      %s101 = scalar_select %p98, %s99, %s100
      %p104 = pneg %p98
      %p105 = scmp.eq.s32.totalorder %s16, 3
      %p106 = por %p104, %p105
      %p107 = scmp.ne.s32.totalorder %s99, %s102
      %p108 = scmp.eq.s32.totalorder %s16, 0
      %p109 = por %p107, %p108
      %p110 = scmp.ne.s32.totalorder %s99, %s102
      %p111 = scmp.eq.s32.totalorder %s21, 3
      %p112 = por %p110, %p111
      %p113 = scmp.ne.s32.totalorder %s102, %s103
      %p114 = scmp.eq.s32.totalorder %s21, 0
      %p115 = por %p113, %p114
      %p116 = scmp.ne.s32.totalorder %s102, %s103
      %p117 = scmp.eq.s32.totalorder %s22, 3
      %p118 = por %p116, %p117
      %p120 = scmp.ne.s32.totalorder %s103, %s119
      %p121 = scmp.eq.s32.totalorder %s22, 0
      %p122 = por %p120, %p121
      %p123 = scmp.le.s32.totalorder 1, %s16
      %p124 = scmp.lt.s32.totalorder %s16, 5
      %p125 = pnand %p123, %p124
      %p126 = pneg %p125
      // Predicated region
      $region9: #{resnext_top_no_softmax.1} parent=5 // pred_check
        _
      $region10: #{resnext_top_no_softmax.1} parent=5 // pred_check_branch
        %128 = sbr.rel (%p125) target = $region12
      $region11: #{resnext_top_no_softmax.1} parent=5 // pred_region
        %s129 = ssub.s32 %s16, 1
        // Predicated region
        $region13: #{resnext_top_no_softmax.1} parent=11 // pred_check
          %p130 = pneg %p37
        $region14: #{resnext_top_no_softmax.1} parent=11 // pred_check_branch
          %132 = sbr.rel (%p130) target = $region16
        $region15: #{resnext_top_no_softmax.1} parent=11 // pred_region
          %s134 = ssub.s32 256, 256
          %135 = vsyncadd [#allocation3], %s134
          %s137 = sshll.u32 [#allocation2], 4
          %s138 = int_to_ptr.vmem [resolvable:$true] %s137
          %140 = dma.hbm_to_vmem [thread:$0]  %s0, 256, %s138, [#allocation3]
        $region16: #{resnext_top_no_softmax.1} parent=11 // pred_fallthru
          _
      $region12: #{resnext_top_no_softmax.1} parent=5 // pred_fallthru
        _
      %p141 = scmp.lt.s32.totalorder %s16, 4
      // Predicated region
      $region17: #{resnext_top_no_softmax.1} parent=5 // pred_check
        %p142 = pneg %p141
      $region18: #{resnext_top_no_softmax.1} parent=5 // pred_check_branch
        %144 = sbr.rel (%p142) target = $region20
      $region19: #{resnext_top_no_softmax.1} parent=5 // pred_region
        // Predicated region
        $region21: #{resnext_top_no_softmax.1} parent=19 // pred_check
          %p145 = pneg %p57
        $region22: #{resnext_top_no_softmax.1} parent=19 // pred_check_branch
          %147 = sbr.rel (%p145) target = $region24
        $region23: #{resnext_top_no_softmax.1} parent=19 // pred_region
          %s148 = sand.u32 %s16, 1
          %s149 = scalar_lea.sflag [#allocation6], %s148
          %s150 = sand.u32 %s47, 1
          %s151 = smul.addr %s150, 256
          %s152 = scalar_lea.vmem [#allocation5], %s151
          %s153 = smul.u32 2, %s16
          %s155 = ssub.s32 4096, 4096
          %156 = vsyncadd %s149, %s155
          %s157 = smul.addr %s153, 64
          %s158 = scalar_lea.hbm %s1, %s157
          %s159 = sshll.u32 %s152, 4
          %s160 = int_to_ptr.vmem [resolvable:$true] %s159
          %165 = dma.hbm_to_vmem [thread:$0]  %s158, 4096, %s160, %s149, 512, 128, 8
        $region24: #{resnext_top_no_softmax.1} parent=19 // pred_fallthru
          _
        // Predicated region
        $region25: #{resnext_top_no_softmax.1} parent=19 // pred_check
          %p166 = pneg %p83
        $region26: #{resnext_top_no_softmax.1} parent=19 // pred_check_branch
          %168 = sbr.rel (%p166) target = $region28
        $region27: #{resnext_top_no_softmax.1} parent=19 // pred_region
          %s169 = sand.u32 %s16, 1
          %s170 = scalar_lea.sflag [#allocation6], %s169
          %s171 = sand.u32 %s73, 1
          %s172 = smul.addr %s171, 2
          %s173 = scalar_lea.vmem [#allocation7], %s172
          %s174 = smul.u32 2, %s16
          %s176 = ssub.s32 32, 32
          %177 = vsyncadd %s170, %s176
          %s178 = smul.addr %s174, 16
          %s179 = scalar_lea.hbm %s2, %s178
          %s181 = sshll.u32 %s173, 4
          %s182 = int_to_ptr.vmem [resolvable:$true] %s181
          %184 = dma.hbm_to_vmem [thread:$0]  %s179, 32, %s182, %s170
        $region28: #{resnext_top_no_softmax.1} parent=19 // pred_fallthru
          _
      $region20: #{resnext_top_no_softmax.1} parent=5 // pred_fallthru
        _
      %p185 = scmp.le.s32.totalorder 1, %s16
      %p186 = scmp.lt.s32.totalorder %s16, 5
      %p187 = pnand %p185, %p186
      %p188 = pneg %p187
      // Predicated region
      $region29: #{resnext_top_no_softmax.1} parent=5 // pred_check
        _
      $region30: #{resnext_top_no_softmax.1} parent=5 // pred_check_branch
        %190 = sbr.rel (%p187) target = $region32
      $region31: #{resnext_top_no_softmax.1} parent=5 // pred_region
        %s191 = ssub.s32 %s16, 1
        // Predicated region
        $region33: #{resnext_top_no_softmax.1} parent=31 // pred_check
          %p192 = pneg %p37
        $region34: #{resnext_top_no_softmax.1} parent=31 // pred_check_branch
          %194 = sbr.rel (%p192) target = $region36
        $region35: #{resnext_top_no_softmax.1} parent=31 // pred_region
          %195 = dma.done [#allocation3], 256
        $region36: #{resnext_top_no_softmax.1} parent=31 // pred_fallthru
          _
        %s196 = sand.u32 %s21, 1
        %s197 = scalar_lea.sflag [#allocation6], %s196
        %s198 = sand.u32 %s50, 1
        %s199 = smul.addr %s198, 256
        %s200 = scalar_lea.vmem [#allocation5], %s199
        // Predicated region
        $region37: #{resnext_top_no_softmax.1} parent=31 // pred_check
          %p201 = pneg %p63
        $region38: #{resnext_top_no_softmax.1} parent=31 // pred_check_branch
          %203 = sbr.rel (%p201) target = $region40
        $region39: #{resnext_top_no_softmax.1} parent=31 // pred_region
          %204 = dma.done %s197, 4096
        $region40: #{resnext_top_no_softmax.1} parent=31 // pred_fallthru
          _
        %s205 = sand.u32 %s21, 1
        %s206 = scalar_lea.sflag [#allocation6], %s205
        %s207 = sand.u32 %s76, 1
        %s208 = smul.addr %s207, 2
        %s209 = scalar_lea.vmem [#allocation7], %s208
        // Predicated region
        $region41: #{resnext_top_no_softmax.1} parent=31 // pred_check
          %p210 = pneg %p89
        $region42: #{resnext_top_no_softmax.1} parent=31 // pred_check_branch
          %212 = sbr.rel (%p210) target = $region44
        $region43: #{resnext_top_no_softmax.1} parent=31 // pred_region
          %213 = dma.done %s206, 32
        $region44: #{resnext_top_no_softmax.1} parent=31 // pred_fallthru
          _
        %p214 = pneg %p37
        %p215 = pneg %p34
        %s216 = sand.u32 %s21, 1
        %s217 = scalar_lea.sflag [#allocation6], %s216
        %s218 = sand.u32 %s50, 1
        %s219 = smul.addr %s218, 256
        %s220 = scalar_lea.vmem [#allocation5], %s219
        %p221 = pneg %p63
        %p222 = pneg %p60
        %s223 = sand.u32 %s21, 1
        %s224 = scalar_lea.sflag [#allocation6], %s223
        %s225 = sand.u32 %s76, 1
        %s226 = smul.addr %s225, 2
        %s227 = scalar_lea.vmem [#allocation7], %s226
        %p228 = pneg %p89
        %p229 = pneg %p86
        %p230 = pneg %p115
        %p231 = pneg %p112
        %s232 = sand.u32 %s102, 1
        %s233 = scalar_lea.sflag [#allocation4], %s232
        %s234 = sand.u32 %s102, 1
        %s235 = smul.addr %s234, 16
        %s236 = scalar_lea.vmem [#allocation8], %s235
        %s237 = smul.u32 2, %s21
        %s238 = smul.u32 2, %s21
        %s239 = smul.u32 2, %s21
        %v240 = vld [vmem:[#allocation2] sm:$0xff]
        %v241 = vld [vmem:[#allocation2 + $0x8] sm:$0xff]
        %v242 = vpack.c.bf16 %v240, %v240
        %v243 = vpack.c.bf16 %v241, %v241
        %v244 = vld [vmem:[%s200] sm:$0xff]
        %v245 = vld [vmem:[%s200 + $0x8] sm:$0xff]
        %v246 = vld [vmem:[%s200 + $0x10] sm:$0xff]
        %v247 = vld [vmem:[%s200 + $0x18] sm:$0xff]
        %v248 = vld [vmem:[%s200 + $0x20] sm:$0xff]
        %v249 = vld [vmem:[%s200 + $0x28] sm:$0xff]
        %v250 = vld [vmem:[%s200 + $0x30] sm:$0xff]
        %v251 = vld [vmem:[%s200 + $0x38] sm:$0xff]
        %v252 = vld [vmem:[%s200 + $0x40] sm:$0xff]
        %v253 = vld [vmem:[%s200 + $0x48] sm:$0xff]
        %v254 = vld [vmem:[%s200 + $0x50] sm:$0xff]
        %v255 = vld [vmem:[%s200 + $0x58] sm:$0xff]
        %v256 = vld [vmem:[%s200 + $0x60] sm:$0xff]
        %v257 = vld [vmem:[%s200 + $0x68] sm:$0xff]
        %v258 = vld [vmem:[%s200 + $0x70] sm:$0xff]
        %v259 = vld [vmem:[%s200 + $0x78] sm:$0xff]
        %v260 = vld [vmem:[%s200 + $0x80] sm:$0xff]
        %v261 = vld [vmem:[%s200 + $0x88] sm:$0xff]
        %v262 = vld [vmem:[%s200 + $0x90] sm:$0xff]
        %v263 = vld [vmem:[%s200 + $0x98] sm:$0xff]
        %v264 = vld [vmem:[%s200 + $0xa0] sm:$0xff]
        %v265 = vld [vmem:[%s200 + $0xa8] sm:$0xff]
        %v266 = vld [vmem:[%s200 + $0xb0] sm:$0xff]
        %v267 = vld [vmem:[%s200 + $0xb8] sm:$0xff]
        %v268 = vld [vmem:[%s200 + $0xc0] sm:$0xff]
        %v269 = vld [vmem:[%s200 + $0xc8] sm:$0xff]
        %v270 = vld [vmem:[%s200 + $0xd0] sm:$0xff]
        %v271 = vld [vmem:[%s200 + $0xd8] sm:$0xff]
        %v272 = vld [vmem:[%s200 + $0xe0] sm:$0xff]
        %v273 = vld [vmem:[%s200 + $0xe8] sm:$0xff]
        %v274 = vld [vmem:[%s200 + $0xf0] sm:$0xff]
        %v275 = vld [vmem:[%s200 + $0xf8] sm:$0xff]
        %v276 = vld [vmem:[%s209] sm:$0x3]
        %v278 = vlaneseq
        %v279 = vshrl.u32 %v278, 7
        %v280 = vsub.s32 0, %v279
        %v281 = vrot.slane %v276, %v280
        %v282 = vlaneseq
        %v283 = vshrl.u32 %v282, 7
        %v284 = vsub.s32 1, %v283
        %v285 = vrot.slane %v276, %v284
        %v320 = vunpack.c.l.b16 %v244
        %v321 = vunpack.c.h.b16 %v244
        %v322 = vunpack.c.l.b16 %v245
        %v323 = vunpack.c.h.b16 %v245
        %v324 = vunpack.c.l.b16 %v246
        %v325 = vunpack.c.h.b16 %v246
        %v326 = vunpack.c.l.b16 %v247
        %v327 = vunpack.c.h.b16 %v247
        %v328 = vunpack.c.l.b16 %v248
        %v329 = vunpack.c.h.b16 %v248
        %v330 = vunpack.c.l.b16 %v249
        %v331 = vunpack.c.h.b16 %v249
        %v332 = vunpack.c.l.b16 %v250
        %v333 = vunpack.c.h.b16 %v250
        %v334 = vunpack.c.l.b16 %v251
        %v335 = vunpack.c.h.b16 %v251
        %v336 = vunpack.c.l.b16 %v252
        %v337 = vunpack.c.h.b16 %v252
        %v338 = vunpack.c.l.b16 %v253
        %v339 = vunpack.c.h.b16 %v253
        %v340 = vunpack.c.l.b16 %v254
        %v341 = vunpack.c.h.b16 %v254
        %v342 = vunpack.c.l.b16 %v255
        %v343 = vunpack.c.h.b16 %v255
        %v344 = vunpack.c.l.b16 %v256
        %v345 = vunpack.c.h.b16 %v256
        %v346 = vunpack.c.l.b16 %v257
        %v347 = vunpack.c.h.b16 %v257
        %v348 = vunpack.c.l.b16 %v258
        %v349 = vunpack.c.h.b16 %v258
        %v350 = vunpack.c.l.b16 %v259
        %v351 = vunpack.c.h.b16 %v259
        %v352 = vunpack.c.l.b16 %v260
        %v353 = vunpack.c.h.b16 %v260
        %v354 = vunpack.c.l.b16 %v261
        %v355 = vunpack.c.h.b16 %v261
        %v356 = vunpack.c.l.b16 %v262
        %v357 = vunpack.c.h.b16 %v262
        %v358 = vunpack.c.l.b16 %v263
        %v359 = vunpack.c.h.b16 %v263
        %v360 = vunpack.c.l.b16 %v264
        %v361 = vunpack.c.h.b16 %v264
        %v362 = vunpack.c.l.b16 %v265
        %v363 = vunpack.c.h.b16 %v265
        %v364 = vunpack.c.l.b16 %v266
        %v365 = vunpack.c.h.b16 %v266
        %v366 = vunpack.c.l.b16 %v267
        %v367 = vunpack.c.h.b16 %v267
        %v368 = vunpack.c.l.b16 %v268
        %v369 = vunpack.c.h.b16 %v268
        %v370 = vunpack.c.l.b16 %v269
        %v371 = vunpack.c.h.b16 %v269
        %v372 = vunpack.c.l.b16 %v270
        %v373 = vunpack.c.h.b16 %v270
        %v374 = vunpack.c.l.b16 %v271
        %v375 = vunpack.c.h.b16 %v271
        %v376 = vunpack.c.l.b16 %v272
        %v377 = vunpack.c.h.b16 %v272
        %v378 = vunpack.c.l.b16 %v273
        %v379 = vunpack.c.h.b16 %v273
        %v380 = vunpack.c.l.b16 %v274
        %v381 = vunpack.c.h.b16 %v274
        %v382 = vunpack.c.l.b16 %v275
        %v383 = vunpack.c.h.b16 %v275
        %v384 = vpack.c.b16 %v322, %v320
        %v385 = vpack.c.b16 %v323, %v321
        %v386 = vpack.c.b16 %v326, %v324
        %v387 = vpack.c.b16 %v327, %v325
        %v388 = vpack.c.b16 %v330, %v328
        %v389 = vpack.c.b16 %v331, %v329
        %v390 = vpack.c.b16 %v334, %v332
        %v391 = vpack.c.b16 %v335, %v333
        %v392 = vpack.c.b16 %v338, %v336
        %v393 = vpack.c.b16 %v339, %v337
        %v394 = vpack.c.b16 %v342, %v340
        %v395 = vpack.c.b16 %v343, %v341
        %v396 = vpack.c.b16 %v346, %v344
        %v397 = vpack.c.b16 %v347, %v345
        %v398 = vpack.c.b16 %v350, %v348
        %v399 = vpack.c.b16 %v351, %v349
        %v400 = vpack.c.b16 %v354, %v352
        %v401 = vpack.c.b16 %v355, %v353
        %v402 = vpack.c.b16 %v358, %v356
        %v403 = vpack.c.b16 %v359, %v357
        %v404 = vpack.c.b16 %v362, %v360
        %v405 = vpack.c.b16 %v363, %v361
        %v406 = vpack.c.b16 %v366, %v364
        %v407 = vpack.c.b16 %v367, %v365
        %v408 = vpack.c.b16 %v370, %v368
        %v409 = vpack.c.b16 %v371, %v369
        %v410 = vpack.c.b16 %v374, %v372
        %v411 = vpack.c.b16 %v375, %v373
        %v412 = vpack.c.b16 %v378, %v376
        %v413 = vpack.c.b16 %v379, %v377
        %v414 = vpack.c.b16 %v382, %v380
        %v415 = vpack.c.b16 %v383, %v381
        %448 = vmatprep.subr.bf16.mxu0 %v385
        %449 = vmatpush1.bf16.msra.mxu0 %v384
        %450 = vmatprep.subr.bf16.mxu0 %v387
        %451 = vmatpush1.bf16.msra.mxu0 %v386
        %452 = vmatprep.subr.bf16.mxu0 %v389
        %453 = vmatpush1.bf16.msra.mxu0 %v388
        %454 = vmatprep.subr.bf16.mxu0 %v391
        %455 = vmatpush1.bf16.msra.mxu0 %v390
        %456 = vmatprep.subr.bf16.mxu0 %v393
        %457 = vmatpush1.bf16.msra.mxu0 %v392
        %458 = vmatprep.subr.bf16.mxu0 %v395
        %459 = vmatpush1.bf16.msra.mxu0 %v394
        %460 = vmatprep.subr.bf16.mxu0 %v397
        %461 = vmatpush1.bf16.msra.mxu0 %v396
        %462 = vmatprep.subr.bf16.mxu0 %v399
        %463 = vmatpush1.bf16.msra.mxu0 %v398
        %464 = vmatprep.subr.bf16.mxu0 %v401
        %465 = vmatpush1.bf16.msra.mxu0 %v400
        %466 = vmatprep.subr.bf16.mxu0 %v403
        %467 = vmatpush1.bf16.msra.mxu0 %v402
        %468 = vmatprep.subr.bf16.mxu0 %v405
        %469 = vmatpush1.bf16.msra.mxu0 %v404
        %470 = vmatprep.subr.bf16.mxu0 %v407
        %471 = vmatpush1.bf16.msra.mxu0 %v406
        %472 = vmatprep.subr.bf16.mxu0 %v409
        %473 = vmatpush1.bf16.msra.mxu0 %v408
        %474 = vmatprep.subr.bf16.mxu0 %v411
        %475 = vmatpush1.bf16.msra.mxu0 %v410
        %476 = vmatprep.subr.bf16.mxu0 %v413
        %477 = vmatpush1.bf16.msra.mxu0 %v412
        %478 = vmatprep.subr.bf16.mxu0 %v415
        %479 = vmatpush1.bf16.msra.mxu0 %v414
        %480 = vmatprep.mubr.bf16.mxu0 %v243
        %481 = vmatmul.mubr.bf16.gmra.mrb[0].mxu0 %v242
        %v482 = vpop.f32.mrb[0].mxu0
        %v483 = vadd.f32 %v281, %v482
        %v484 = vpop.f32.mrb[0].mxu0
        %v485 = vadd.f32 %v285, %v484
        %v486 = vpop.f32.mrb[0].mxu0
        %v487 = vpop.f32.mrb[0].mxu0
        %488 = vdwg.mxu0
        %489 = vst [vmem:[%s236] sm:$0xff] %v483
        %490 = vst [vmem:[%s236 + $0x8] sm:$0xff] %v485
        %s491 = sand.u32 %s102, 1
        %s492 = scalar_lea.sflag [#allocation4], %s491
        %s493 = sand.u32 %s102, 1
        %s494 = smul.addr %s493, 16
        %s495 = scalar_lea.vmem [#allocation8], %s494
        // Predicated region
        $region45: #{resnext_top_no_softmax.1} parent=31 // pred_check
          %p496 = pneg %p112
        $region46: #{resnext_top_no_softmax.1} parent=31 // pred_check_branch
          %498 = sbr.rel (%p496) target = $region48
        $region47: #{resnext_top_no_softmax.1} parent=31 // pred_region
          %s499 = smul.u32 2, %s21
          %s501 = ssub.s32 256, 256
          %502 = vsyncadd %s492, %s501
          %s503 = smul.addr %s499, 128
          %s504 = scalar_lea.hbm %s3, %s503
          %s506 = sshll.u32 %s495, 4
          %s507 = int_to_ptr.vmem [resolvable:$true] %s506
          %509 = dma.vmem_to_hbm [thread:$0]  %s507, 256, %s504, %s492
        $region48: #{resnext_top_no_softmax.1} parent=31 // pred_fallthru
          _
      $region32: #{resnext_top_no_softmax.1} parent=5 // pred_fallthru
        _
      %p510 = scmp.le.s32.totalorder 2, %s16
      // Predicated region
      $region49: #{resnext_top_no_softmax.1} parent=5 // pred_check
        %p511 = pneg %p510
      $region50: #{resnext_top_no_softmax.1} parent=5 // pred_check_branch
        %513 = sbr.rel (%p511) target = $region52
      $region51: #{resnext_top_no_softmax.1} parent=5 // pred_region
        %s514 = ssub.s32 %s16, 2
        // Predicated region
        $region53: #{resnext_top_no_softmax.1} parent=51 // pred_check
          %p515 = pneg %p118
        $region54: #{resnext_top_no_softmax.1} parent=51 // pred_check_branch
          %517 = sbr.rel (%p515) target = $region56
        $region55: #{resnext_top_no_softmax.1} parent=51 // pred_region
          %s518 = sand.u32 %s103, 1
          %s519 = scalar_lea.sflag [#allocation4], %s518
          %s520 = sand.u32 %s103, 1
          %s521 = smul.addr %s520, 16
          %s522 = scalar_lea.vmem [#allocation8], %s521
          %523 = dma.done %s519, 256
        $region56: #{resnext_top_no_softmax.1} parent=51 // pred_fallthru
          _
      $region52: #{resnext_top_no_softmax.1} parent=5 // pred_fallthru
        _
    $region6: #{resnext_top_no_softmax.1} parent=1 // loop_footer
      %s20 = sadd.s32 1, %s16
    $region7: #{resnext_top_no_softmax.1} parent=1 // loop_footer_branch
      %15 = sbr.rel target = $region3
    $region8: #{resnext_top_no_softmax.1} parent=1 // loop_exit
      _
    %524 = vsyncpa [#allocation3], 1
    %s525 = scalar_lea.sflag [#allocation3], 1
    %526 = vsyncpa %s525, 1
    %527 = vsyncpa [#allocation6], 1
    %s528 = scalar_lea.sflag [#allocation6], 1
    %529 = vsyncpa %s528, 1
    %530 = vsyncpa [#allocation4], 1
    %s531 = scalar_lea.sflag [#allocation4], 1
    %532 = vsyncpa %s531, 1

</llo_original>
